<compile_context>
chip_gen: v7x
topology: tpu7x:2x2x1
jax: 0.10.0
libtpu: 0.0.40
codegen_flags: <defaults>
</compile_context>

<pallas_src>
import functools

import jax
import jax.numpy as jnp
from jax import lax
from jax.experimental import pallas as pl
from jax.experimental.pallas import tpu as pltpu


def _ndcc_loss_kernel(targets_ref, logits_ref, embeds_ref, means_ref,
                      sigma2s_ref, out_ref, ce_acc_ref, md_acc_ref,
                      *, w_ccg, w_nll, n_total):
    i = pl.program_id(0)

    @pl.when(i == 0)
    def _init():
        ce_acc_ref[...] = jnp.zeros_like(ce_acc_ref)
        md_acc_ref[...] = jnp.zeros_like(md_acc_ref)
        out_ref[...] = jnp.zeros_like(out_ref)

    logits = logits_ref[...].astype(jnp.float32)        # [TN, C]
    embeds = embeds_ref[...].astype(jnp.float32)        # [TN, D]
    targets = targets_ref[...]                          # [TN, 1] int32

    tn, c = logits.shape

    # Mask out padded rows of the (possibly ragged) last batch tile.
    row_ids = i * tn + lax.broadcasted_iota(jnp.int32, (tn, 1), 0)
    row_valid = row_ids < n_total                       # [TN, 1] bool

    # ---- cross-entropy partial sum (numerically stable logsumexp) ----
    logits_m = jnp.where(row_valid, logits, 0.0)        # clean padded rows
    m = jnp.max(logits_m, axis=-1, keepdims=True)                          # [TN, 1]
    lse = jnp.log(jnp.sum(jnp.exp(logits_m - m), axis=-1, keepdims=True)) + m
    class_ids = lax.broadcasted_iota(jnp.int32, (tn, c), 1)
    tgt_mask = class_ids == targets                                        # [TN, C]
    tgt_logit = jnp.sum(jnp.where(tgt_mask, logits_m, 0.0),
                        axis=-1, keepdims=True)                            # [TN, 1]
    ce_tile = jnp.sum(jnp.where(row_valid, lse - tgt_logit, 0.0),
                      keepdims=True)                                       # [1, 1]

    # ---- Mahalanobis partial sum ----
    means = means_ref[...].astype(jnp.float32)                             # [C, D]
    inv_sig = 1.0 / sigma2s_ref[...].astype(jnp.float32)                   # [1, D]
    # Row gather means[targets] as a one-hot matmul on the MXU (exact, f32).
    onehot = tgt_mask.astype(jnp.float32)                                  # [TN, C]
    means_t = jnp.dot(onehot, means, preferred_element_type=jnp.float32)   # [TN, D]
    diff = jnp.where(row_valid, embeds - means_t, 0.0)
    md_tile = jnp.sum(diff * diff * inv_sig, keepdims=True)                # [1, 1]

    ce_acc_ref[...] += ce_tile
    md_acc_ref[...] += md_tile

    @pl.when(i == pl.num_programs(0) - 1)
    def _finalize():
        sigma2s = sigma2s_ref[...].astype(jnp.float32)
        logdet = jnp.sum(jnp.log(sigma2s), keepdims=True) * 0.5            # [1, 1]
        ce = ce_acc_ref[...] * (1.0 / n_total)
        md = md_acc_ref[...] * (1.0 / (2.0 * n_total))
        out_ref[...] = ce + w_ccg * ((1.0 + w_nll) * md + w_nll * logdet)


def ndcc_loss(logits, norm_embeds, means, sigma2s, targets, *,
              w_ccg, w_nll, tile_n=128):
    n, c = logits.shape
    _, d = norm_embeds.shape
    targets_2d = targets.astype(jnp.int32).reshape(n, 1)
    sigma2s_2d = sigma2s.reshape(1, d)

    # Batch tile: multiple of 8 (sublane) when tiling; the full batch when it
    # already fits in a single block (full-dim blocks bypass the 8-row rule).
    if n <= tile_n:
        tn = n
    else:
        tn = max(8, (tile_n // 8) * 8)
    grid_n = pl.cdiv(n, tn)

    kernel = functools.partial(_ndcc_loss_kernel, w_ccg=float(w_ccg),
                               w_nll=float(w_nll), n_total=n)

    out = pl.pallas_call(
        kernel,
        out_shape=jax.ShapeDtypeStruct((1, 1), jnp.float32),
        grid_spec=pltpu.PrefetchScalarGridSpec(
            num_scalar_prefetch=0,
            grid=(grid_n,),
            in_specs=[
                pl.BlockSpec((tn, 1), lambda i: (i, 0)),   # targets   (blocked)
                pl.BlockSpec((tn, c), lambda i: (i, 0)),   # logits    (blocked)
                pl.BlockSpec((tn, d), lambda i: (i, 0)),   # embeds    (blocked)
                pl.BlockSpec((c, d), lambda i: (0, 0)),    # means     (resident)
                pl.BlockSpec((1, d), lambda i: (0, 0)),    # sigma2s   (resident)
            ],
            out_specs=pl.BlockSpec((1, 1), lambda i: (0, 0)),
            scratch_shapes=[pltpu.VMEM((1, 1), jnp.float32),   # CE running sum
                            pltpu.VMEM((1, 1), jnp.float32)],  # md running sum
        ),
        compiler_params=pltpu.CompilerParams(
            dimension_semantics=("arbitrary",),   # carried scalar accumulators
            vmem_limit_bytes=32 * 1024 * 1024,    # safe on v5e/v6e/v7x
        ),
    )(targets_2d, logits, norm_embeds, means, sigma2s_2d)
    return out[0, 0]


def ndcc_loss_ref(logits, norm_embeds, means, sigma2s, targets, *, w_ccg, w_nll):
    """Pure-JAX reference mirroring the PyTorch forward."""
    n = logits.shape[0]
    logp = jax.nn.log_softmax(logits, axis=-1)
    ce = -jnp.mean(jnp.take_along_axis(logp, targets[:, None], axis=-1))
    md = jnp.sum((norm_embeds - means[targets]) ** 2 / sigma2s) / (2 * n)
    nll = jnp.sum(jnp.log(sigma2s)) / 2 + md
    return ce + w_ccg * (md + w_nll * nll)


if __name__ == "__main__":
    # Small, deterministic synthetic setup (no checkpoint loading).
    N, C, D = 20, 8, 32          # batch, num classes, embedding dim
    w_ccg, w_nll = 0.5, 0.25

    key = jax.random.PRNGKey(0)
    k1, k2, k3, k4, k5 = jax.random.split(key, 5)

    logits = jax.random.normal(k1, (N, C), dtype=jnp.float32)
    norm_embeds = jax.random.normal(k2, (N, D), dtype=jnp.float32)
    means = jax.random.normal(k3, (C, D), dtype=jnp.float32)
    # sigma2s must be positive (diagonal variances)
    sigma2s = jax.nn.softplus(jax.random.normal(k4, (D,), dtype=jnp.float32)) + 0.1
    targets = jax.random.randint(k5, (N,), 0, C, dtype=jnp.int32)

    ref = ndcc_loss_ref(logits, norm_embeds, means, sigma2s, targets,
                        w_ccg=w_ccg, w_nll=w_nll)

    # Multi-tile path: grid=3, ragged last tile (rows 16..19 valid) is masked.
    loss_tiled = ndcc_loss(logits, norm_embeds, means, sigma2s, targets,
                           w_ccg=w_ccg, w_nll=w_nll, tile_n=8)
    loss_tiled = jax.block_until_ready(loss_tiled)
    assert jnp.allclose(loss_tiled, ref, rtol=1e-5, atol=1e-5), (loss_tiled, ref)

    # Single-block path: whole batch in one tile (default tile_n).
    loss_single = ndcc_loss(logits, norm_embeds, means, sigma2s, targets,
                            w_ccg=w_ccg, w_nll=w_nll, tile_n=128)
    loss_single = jax.block_until_ready(loss_single)
    assert jnp.allclose(loss_single, ref, rtol=1e-5, atol=1e-5), (loss_single, ref)

    print("KERNEL_OK")
</pallas_src>

<mosaic_0001>
module attributes {stable_mosaic.version = 11 : i64} {
  func.func @_ndcc_loss_kernel(%arg0: i32, %arg1: memref<8x1xi32, #tpu.memory_space<vmem>>, %arg2: memref<8x8xf32, #tpu.memory_space<vmem>>, %arg3: memref<8x32xf32, #tpu.memory_space<vmem>>, %arg4: memref<8x32xf32, #tpu.memory_space<vmem>>, %arg5: memref<1x32xf32, #tpu.memory_space<vmem>>, %arg6: memref<1x1xf32, #tpu.memory_space<vmem>>, %arg7: memref<1x1xf32, #tpu.memory_space<vmem>>, %arg8: memref<1x1xf32, #tpu.memory_space<vmem>>) attributes {dimension_semantics = [#tpu.dimension_semantics<arbitrary>], iteration_bounds = array<i64: 3>, scalar_prefetch = 0 : i64, scratch_operands = 2 : i64, tpu.core_type = #tpu.core_type<tc>, window_params = [{transform_indices = @transform_0, window_bounds = array<i64: 8, 1>}, {transform_indices = @transform_1, window_bounds = array<i64: 8, 8>}, {transform_indices = @transform_2, window_bounds = array<i64: 8, 32>}, {pipeline_mode = #tpu.pipeline_mode<synchronous>, transform_indices = @transform_3, window_bounds = array<i64: 8, 32>}, {pipeline_mode = #tpu.pipeline_mode<synchronous>, transform_indices = @transform_4, window_bounds = array<i64: 1, 32>}, {pipeline_mode = #tpu.pipeline_mode<synchronous>, transform_indices = @transform_5, window_bounds = array<i64: 1, 1>}]} {
    %c0_i32 = arith.constant 0 : i32
    %0 = arith.cmpi eq, %arg0, %c0_i32 : i32
    %1 = arith.extui %0 : i1 to i32
    %c0_i32_0 = arith.constant 0 : i32
    %2 = arith.cmpi ne, %1, %c0_i32_0 : i32
    scf.if %2 {
      %cst_29 = arith.constant 0.000000e+00 : f32
      %69 = vector.broadcast %cst_29 : f32 to vector<1x1xf32>
      %c0_30 = arith.constant 0 : index
      %c0_31 = arith.constant 0 : index
      %70 = vector.load %arg7[%c0_30, %c0_31] : memref<1x1xf32, #tpu.memory_space<vmem>>, vector<1x1xf32>
      tpu.vector_store %arg7[%c0_30, %c0_31], %69 {strides = array<i32>} : memref<1x1xf32, #tpu.memory_space<vmem>>, vector<1x1xf32>,
      %cst_32 = arith.constant 0.000000e+00 : f32
      %71 = vector.broadcast %cst_32 : f32 to vector<1x1xf32>
      %c0_33 = arith.constant 0 : index
      %c0_34 = arith.constant 0 : index
      %72 = vector.load %arg8[%c0_33, %c0_34] : memref<1x1xf32, #tpu.memory_space<vmem>>, vector<1x1xf32>
      tpu.vector_store %arg8[%c0_33, %c0_34], %71 {strides = array<i32>} : memref<1x1xf32, #tpu.memory_space<vmem>>, vector<1x1xf32>,
      %cst_35 = arith.constant 0.000000e+00 : f32
      %73 = vector.broadcast %cst_35 : f32 to vector<1x1xf32>
      %c0_36 = arith.constant 0 : index
      %c0_37 = arith.constant 0 : index
      %74 = vector.load %arg6[%c0_36, %c0_37] : memref<1x1xf32, #tpu.memory_space<vmem>>, vector<1x1xf32>
      tpu.vector_store %arg6[%c0_36, %c0_37], %73 {strides = array<i32>} : memref<1x1xf32, #tpu.memory_space<vmem>>, vector<1x1xf32>,
    } else {
    }
    %c0 = arith.constant 0 : index
    %c0_1 = arith.constant 0 : index
    %3 = vector.load %arg2[%c0, %c0_1] : memref<8x8xf32, #tpu.memory_space<vmem>>, vector<8x8xf32>
    %c0_2 = arith.constant 0 : index
    %c0_3 = arith.constant 0 : index
    %4 = vector.load %arg3[%c0_2, %c0_3] : memref<8x32xf32, #tpu.memory_space<vmem>>, vector<8x32xf32>
    %c0_4 = arith.constant 0 : index
    %c0_5 = arith.constant 0 : index
    %5 = vector.load %arg1[%c0_4, %c0_5] : memref<8x1xi32, #tpu.memory_space<vmem>>, vector<8x1xi32>
    %c8_i32 = arith.constant 8 : i32
    %6 = arith.muli %arg0, %c8_i32 : i32
    %7 = tpu.iota {dimensions = array<i32: 0>} : vector<8x1xi32>
    %8 = vector.broadcast %6 : i32 to vector<8x1xi32>
    %9 = arith.addi %8, %7 : vector<8x1xi32>
    %c20_i32 = arith.constant 20 : i32
    %10 = vector.broadcast %c20_i32 : i32 to vector<8x1xi32>
    %11 = arith.cmpi slt, %9, %10 : vector<8x1xi32>
    %cst = arith.constant 0.000000e+00 : f32
    %12 = vector.shape_cast %11 : vector<8x1xi1> to vector<8x1xi1>
    %13 = vector.broadcast %12 : vector<8x1xi1> to vector<8x8xi1>
    %14 = vector.broadcast %cst : f32 to vector<8x8xf32>
    %15 = arith.select %13, %3, %14 : vector<8x8xi1>, vector<8x8xf32>
    %cst_6 = arith.constant dense<0xFF800000> : vector<8xf32>
    %16 = vector.multi_reduction <maximumf>, %15, %cst_6 [1] : vector<8x8xf32> to vector<8xf32>
    %17 = vector.shape_cast %16 : vector<8xf32> to vector<8x1xf32>
    %18 = vector.broadcast %17 : vector<8x1xf32> to vector<8x8xf32>
    %19 = arith.subf %15, %18 : vector<8x8xf32>
    %20 = math.exp %19 : vector<8x8xf32>
    %cst_7 = arith.constant dense<0.000000e+00> : vector<8xf32>
    %21 = vector.multi_reduction <add>, %20, %cst_7 [1] : vector<8x8xf32> to vector<8xf32>
    %22 = vector.shape_cast %21 : vector<8xf32> to vector<8x1xf32>
    %23 = math.log %22 : vector<8x1xf32>
    %24 = arith.addf %23, %17 : vector<8x1xf32>
    %25 = tpu.iota {dimensions = array<i32: 1>} : vector<8x8xi32>
    %26 = vector.broadcast %5 : vector<8x1xi32> to vector<8x8xi32>
    %27 = arith.cmpi eq, %25, %26 : vector<8x8xi32>
    %cst_8 = arith.constant 0.000000e+00 : f32
    %28 = vector.broadcast %cst_8 : f32 to vector<8x8xf32>
    %29 = arith.select %27, %15, %28 : vector<8x8xi1>, vector<8x8xf32>
    %cst_9 = arith.constant dense<0.000000e+00> : vector<8xf32>
    %30 = vector.multi_reduction <add>, %29, %cst_9 [1] : vector<8x8xf32> to vector<8xf32>
    %31 = vector.shape_cast %30 : vector<8xf32> to vector<8x1xf32>
    %32 = arith.subf %24, %31 : vector<8x1xf32>
    %cst_10 = arith.constant 0.000000e+00 : f32
    %33 = vector.broadcast %cst_10 : f32 to vector<8x1xf32>
    %34 = arith.select %11, %32, %33 : vector<8x1xi1>, vector<8x1xf32>
    %35 = vector.shape_cast %34 : vector<8x1xf32> to vector<1x8x1xf32>
    %cst_11 = arith.constant dense<0.000000e+00> : vector<1xf32>
    %36 = vector.multi_reduction <add>, %35, %cst_11 [1, 2] : vector<1x8x1xf32> to vector<1xf32>
    %37 = vector.shape_cast %36 : vector<1xf32> to vector<1x1x1xf32>
    %38 = vector.extract %37[0, 0, 0] : f32 from vector<1x1x1xf32>
    %39 = vector.broadcast %38 : f32 to vector<1x1xf32>
    %c0_12 = arith.constant 0 : index
    %c0_13 = arith.constant 0 : index
    %40 = vector.load %arg4[%c0_12, %c0_13] : memref<8x32xf32, #tpu.memory_space<vmem>>, vector<8x32xf32>
    %c0_14 = arith.constant 0 : index
    %c0_15 = arith.constant 0 : index
    %41 = vector.load %arg5[%c0_14, %c0_15] : memref<1x32xf32, #tpu.memory_space<vmem>>, vector<1x32xf32>
    %cst_16 = arith.constant 1.000000e+00 : f32
    %42 = vector.broadcast %cst_16 : f32 to vector<1x32xf32>
    %43 = arith.divf %42, %41 : vector<1x32xf32>
    %44 = arith.extui %27 : vector<8x8xi1> to vector<8x8xi32>
    %45 = arith.sitofp %44 : vector<8x8xi32> to vector<8x8xf32>
    %cst_17 = arith.constant dense<0.000000e+00> : vector<8x32xf32>
    %46 = tpu.matmul %45, %40, %cst_17 {dimension_numbers = #tpu.dot_dimension_numbers<[1], [0], [0], [1], [0, 0, 1, 1], [], []>} : vector<8x8xf32>, vector<8x32xf32>, vector<8x32xf32> -> vector<8x32xf32>
    %47 = arith.subf %4, %46 : vector<8x32xf32>
    %cst_18 = arith.constant 0.000000e+00 : f32
    %48 = vector.shape_cast %11 : vector<8x1xi1> to vector<8x1xi1>
    %49 = vector.broadcast %48 : vector<8x1xi1> to vector<8x32xi1>
    %50 = vector.broadcast %cst_18 : f32 to vector<8x32xf32>
    %51 = arith.select %49, %47, %50 : vector<8x32xi1>, vector<8x32xf32>
    %52 = arith.mulf %51, %51 : vector<8x32xf32>
    %53 = vector.broadcast %43 : vector<1x32xf32> to vector<8x32xf32>
    %54 = arith.mulf %52, %53 : vector<8x32xf32>
    %55 = vector.shape_cast %54 : vector<8x32xf32> to vector<1x8x32xf32>
    %cst_19 = arith.constant dense<0.000000e+00> : vector<1xf32>
    %56 = vector.multi_reduction <add>, %55, %cst_19 [1, 2] : vector<1x8x32xf32> to vector<1xf32>
    %57 = vector.shape_cast %56 : vector<1xf32> to vector<1x1x1xf32>
    %58 = vector.extract %57[0, 0, 0] : f32 from vector<1x1x1xf32>
    %59 = vector.broadcast %58 : f32 to vector<1x1xf32>
    %c0_20 = arith.constant 0 : index
    %c0_21 = arith.constant 0 : index
    %60 = vector.load %arg7[%c0_20, %c0_21] : memref<1x1xf32, #tpu.memory_space<vmem>>, vector<1x1xf32>
    %61 = arith.addf %60, %39 : vector<1x1xf32>
    %c0_22 = arith.constant 0 : index
    %c0_23 = arith.constant 0 : index
    %62 = vector.load %arg7[%c0_22, %c0_23] : memref<1x1xf32, #tpu.memory_space<vmem>>, vector<1x1xf32>
    tpu.vector_store %arg7[%c0_22, %c0_23], %61 {strides = array<i32>} : memref<1x1xf32, #tpu.memory_space<vmem>>, vector<1x1xf32>,
    %c0_24 = arith.constant 0 : index
    %c0_25 = arith.constant 0 : index
    %63 = vector.load %arg8[%c0_24, %c0_25] : memref<1x1xf32, #tpu.memory_space<vmem>>, vector<1x1xf32>
    %64 = arith.addf %63, %59 : vector<1x1xf32>
    %c0_26 = arith.constant 0 : index
    %c0_27 = arith.constant 0 : index
    %65 = vector.load %arg8[%c0_26, %c0_27] : memref<1x1xf32, #tpu.memory_space<vmem>>, vector<1x1xf32>
    tpu.vector_store %arg8[%c0_26, %c0_27], %64 {strides = array<i32>} : memref<1x1xf32, #tpu.memory_space<vmem>>, vector<1x1xf32>,
    %c2_i32 = arith.constant 2 : i32
    %66 = arith.cmpi eq, %arg0, %c2_i32 : i32
    %67 = arith.extui %66 : i1 to i32
    %c0_i32_28 = arith.constant 0 : i32
    %68 = arith.cmpi ne, %67, %c0_i32_28 : i32
    scf.if %68 {
      %c0_29 = arith.constant 0 : index
      %c0_30 = arith.constant 0 : index
      %69 = vector.load %arg5[%c0_29, %c0_30] : memref<1x32xf32, #tpu.memory_space<vmem>>, vector<1x32xf32>
      %70 = math.log %69 : vector<1x32xf32>
      %71 = vector.shape_cast %70 : vector<1x32xf32> to vector<1x1x32xf32>
      %cst_31 = arith.constant dense<0.000000e+00> : vector<1xf32>
      %72 = vector.multi_reduction <add>, %71, %cst_31 [1, 2] : vector<1x1x32xf32> to vector<1xf32>
      %73 = vector.shape_cast %72 : vector<1xf32> to vector<1x1x1xf32>
      %74 = vector.extract %73[0, 0, 0] : f32 from vector<1x1x1xf32>
      %75 = vector.broadcast %74 : f32 to vector<1x1xf32>
      %cst_32 = arith.constant 5.000000e-01 : f32
      %76 = vector.broadcast %cst_32 : f32 to vector<1x1xf32>
      %77 = arith.mulf %75, %76 : vector<1x1xf32>
      %c0_33 = arith.constant 0 : index
      %c0_34 = arith.constant 0 : index
      %78 = vector.load %arg7[%c0_33, %c0_34] : memref<1x1xf32, #tpu.memory_space<vmem>>, vector<1x1xf32>
      %cst_35 = arith.constant 5.000000e-02 : f32
      %79 = vector.broadcast %cst_35 : f32 to vector<1x1xf32>
      %80 = arith.mulf %78, %79 : vector<1x1xf32>
      %c0_36 = arith.constant 0 : index
      %c0_37 = arith.constant 0 : index
      %81 = vector.load %arg8[%c0_36, %c0_37] : memref<1x1xf32, #tpu.memory_space<vmem>>, vector<1x1xf32>
      %cst_38 = arith.constant 2.500000e-02 : f32
      %82 = vector.broadcast %cst_38 : f32 to vector<1x1xf32>
      %83 = arith.mulf %81, %82 : vector<1x1xf32>
      %cst_39 = arith.constant 1.250000e+00 : f32
      %84 = vector.broadcast %cst_39 : f32 to vector<1x1xf32>
      %85 = arith.mulf %84, %83 : vector<1x1xf32>
      %cst_40 = arith.constant 2.500000e-01 : f32
      %86 = vector.broadcast %cst_40 : f32 to vector<1x1xf32>
      %87 = arith.mulf %86, %77 : vector<1x1xf32>
      %88 = arith.addf %85, %87 : vector<1x1xf32>
      %cst_41 = arith.constant 5.000000e-01 : f32
      %89 = vector.broadcast %cst_41 : f32 to vector<1x1xf32>
      %90 = arith.mulf %89, %88 : vector<1x1xf32>
      %91 = arith.addf %80, %90 : vector<1x1xf32>
      %c0_42 = arith.constant 0 : index
      %c0_43 = arith.constant 0 : index
      %92 = vector.load %arg6[%c0_42, %c0_43] : memref<1x1xf32, #tpu.memory_space<vmem>>, vector<1x1xf32>
      tpu.vector_store %arg6[%c0_42, %c0_43], %91 {strides = array<i32>} : memref<1x1xf32, #tpu.memory_space<vmem>>, vector<1x1xf32>,
    } else {
    }
    return
  }
  func.func @transform_0(%arg0: i32) -> (i32, i32) {
    %c0_i32 = arith.constant 0 : i32
    %c0_i32_0 = arith.constant 0 : i32
    return %arg0, %c0_i32 : i32, i32
  }
  func.func @transform_1(%arg0: i32) -> (i32, i32) {
    %c0_i32 = arith.constant 0 : i32
    %c0_i32_0 = arith.constant 0 : i32
    return %arg0, %c0_i32 : i32, i32
  }
  func.func @transform_2(%arg0: i32) -> (i32, i32) {
    %c0_i32 = arith.constant 0 : i32
    %c0_i32_0 = arith.constant 0 : i32
    return %arg0, %c0_i32 : i32, i32
  }
  func.func @transform_3(%arg0: i32) -> (i32, i32) {
    %c0_i32 = arith.constant 0 : i32
    %c0_i32_0 = arith.constant 0 : i32
    %c0_i32_1 = arith.constant 0 : i32
    return %c0_i32, %c0_i32_0 : i32, i32
  }
  func.func @transform_4(%arg0: i32) -> (i32, i32) {
    %c0_i32 = arith.constant 0 : i32
    %c0_i32_0 = arith.constant 0 : i32
    %c0_i32_1 = arith.constant 0 : i32
    return %c0_i32, %c0_i32_0 : i32, i32
  }
  func.func @transform_5(%arg0: i32) -> (i32, i32) {
    %c0_i32 = arith.constant 0 : i32
    %c0_i32_0 = arith.constant 0 : i32
    %c0_i32_1 = arith.constant 0 : i32
    return %c0_i32, %c0_i32_0 : i32, i32
  }
}

</mosaic_0001>

<llo_original>
// kernel: tpu_custom_call.1
$region0: #{tpu_custom_call.1}
  #allocation0 [shape = 'u32[]', space=smem, size = 0x4, offset = 0x4, fixed_abs, tag = 'smem constant byte address 0x4 - core index']
  #allocation1 [shape = 'u32[144,128]{1,0:T(1,128)}', space=vmem, size = 0x12000, scoped, tag = 'internal scratch']
  #allocation2 [shape = 'f32[1,1]{1,0:T(1,128)}', space=vmem, size = 0x200, scoped, tag = 'scratch operand']
  #allocation3 [shape = 'f32[1,1]{1,0:T(1,128)}', space=vmem, size = 0x200, scoped, tag = 'scratch operand']
  %s0 = inlined_call_operand.vmem [shape: s32[20,1], index: 0, kind: input, shape index: {}]
  %s1 = inlined_call_operand.vmem [shape: f32[20,8], index: 1, kind: input, shape index: {}]
  %s2 = inlined_call_operand.vmem [shape: f32[20,32], index: 2, kind: input, shape index: {}]
  %s3 = inlined_call_operand.vmem [shape: f32[8,32], index: 3, kind: input, shape index: {}]
  %s4 = inlined_call_operand.vmem [shape: f32[1,32], index: 4, kind: input, shape index: {}]
  %s5 = inlined_call_operand.hbm [shape: f32[1,1], index: 5, kind: output, shape index: {}]
  %s6 = sld [smem:[#allocation0]]
  $region61: #{tpu_custom_call.1} parent=0
    _
  %s8 = ssub.s32 1, %s6
  %s9 = scalar_select 0, %s8, %s6
  $region1: #{tpu_custom_call.1} parent=0
    #allocation4 [shape = 'u8[512]{0}', space=vmem, size = 0x400, scoped, tag = 'output window, operand 0, single buffered']
    #allocation5 [shape = 's32[2]{0}', space=sflag, size = 0x8, scoped, tag = 'scoped memory for tpu_custom_call.1']
    %10 = vsyncpa [#allocation5], 0
    loop: start=0, step=1, limit=5
    $region2: #{tpu_custom_call.1} parent=1 // loop_pre_header
      _
    $region3: #{tpu_custom_call.1} parent=1 // loop_header
      %s12 = sphi 0, %s16
      %p13 = scmp.ge.s32.totalorder %s12, 5
      %s22 = sphi 0, %s24
      %s25 = sphi 0, %s22
      %s26 = sphi 0, %s25
      %s42 = sphi 0, %s26
      %s48 = sphi 0, %s50
      %s51 = sphi 0, %s48
      %s52 = sphi 0, %s51
      %s68 = sphi 0, %s52
      %s74 = sphi 0, %s76
      %s77 = sphi 0, %s74
      %s78 = sphi 0, %s77
      %s94 = sphi 0, %s78
      %s98 = sphi 0, %s98
      %s100 = sphi 0, %s98
      %s101 = sphi 0, %s100
      %s115 = sphi 0, %s101
      %s119 = sphi 0, %s119
      %s121 = sphi 0, %s119
      %s122 = sphi 0, %s121
      %s136 = sphi 0, %s122
      %s140 = sphi 0, %s140
      %s142 = sphi 0, %s140
      %s143 = sphi 0, %s142
      %s157 = sphi 0, %s143
    $region4: #{tpu_custom_call.1} parent=1 // loop_header_branch
      %15 = sbr.rel (%p13) target = $region8
    $region5: #{tpu_custom_call.1} parent=1 // loop_body
      %s17 = ssub.s32 %s12, 1
      %s18 = ssub.s32 %s12, 2
      %s19 = sadd.s32 %s12, 1
      %s20 = ssub.s32 %s12, %s19
      %p21 = scmp.eq.s32.totalorder %s20, 0
      %s23 = sadd.s32 %s22, 1
      %s24 = scalar_select %p21, %s22, %s23
      %p27 = pneg %p21
      %p28 = scmp.eq.s32.totalorder %s12, 2
      %p29 = por %p27, %p28
      %p30 = scmp.ne.s32.totalorder %s22, %s25
      %p31 = scmp.eq.s32.totalorder %s12, 0
      %p32 = por %p30, %p31
      %p33 = scmp.ne.s32.totalorder %s22, %s25
      %p34 = scmp.eq.s32.totalorder %s17, 2
      %p35 = por %p33, %p34
      %p36 = scmp.ne.s32.totalorder %s25, %s26
      %p37 = scmp.eq.s32.totalorder %s17, 0
      %p38 = por %p36, %p37
      %p39 = scmp.ne.s32.totalorder %s25, %s26
      %p40 = scmp.eq.s32.totalorder %s18, 2
      %p41 = por %p39, %p40
      %p43 = scmp.ne.s32.totalorder %s26, %s42
      %p44 = scmp.eq.s32.totalorder %s18, 0
      %p45 = por %p43, %p44
      %s46 = ssub.s32 %s12, %s19
      %p47 = scmp.eq.s32.totalorder %s46, 0
      %s49 = sadd.s32 %s48, 1
      %s50 = scalar_select %p47, %s48, %s49
      %p53 = pneg %p47
      %p54 = scmp.eq.s32.totalorder %s12, 2
      %p55 = por %p53, %p54
      %p56 = scmp.ne.s32.totalorder %s48, %s51
      %p57 = scmp.eq.s32.totalorder %s12, 0
      %p58 = por %p56, %p57
      %p59 = scmp.ne.s32.totalorder %s48, %s51
      %p60 = scmp.eq.s32.totalorder %s17, 2
      %p61 = por %p59, %p60
      %p62 = scmp.ne.s32.totalorder %s51, %s52
      %p63 = scmp.eq.s32.totalorder %s17, 0
      %p64 = por %p62, %p63
      %p65 = scmp.ne.s32.totalorder %s51, %s52
      %p66 = scmp.eq.s32.totalorder %s18, 2
      %p67 = por %p65, %p66
      %p69 = scmp.ne.s32.totalorder %s52, %s68
      %p70 = scmp.eq.s32.totalorder %s18, 0
      %p71 = por %p69, %p70
      %s72 = ssub.s32 %s12, %s19
      %p73 = scmp.eq.s32.totalorder %s72, 0
      %s75 = sadd.s32 %s74, 1
      %s76 = scalar_select %p73, %s74, %s75
      %p79 = pneg %p73
      %p80 = scmp.eq.s32.totalorder %s12, 2
      %p81 = por %p79, %p80
      %p82 = scmp.ne.s32.totalorder %s74, %s77
      %p83 = scmp.eq.s32.totalorder %s12, 0
      %p84 = por %p82, %p83
      %p85 = scmp.ne.s32.totalorder %s74, %s77
      %p86 = scmp.eq.s32.totalorder %s17, 2
      %p87 = por %p85, %p86
      %p88 = scmp.ne.s32.totalorder %s77, %s78
      %p89 = scmp.eq.s32.totalorder %s17, 0
      %p90 = por %p88, %p89
      %p91 = scmp.ne.s32.totalorder %s77, %s78
      %p92 = scmp.eq.s32.totalorder %s18, 2
      %p93 = por %p91, %p92
      %p95 = scmp.ne.s32.totalorder %s78, %s94
      %p96 = scmp.eq.s32.totalorder %s18, 0
      %p97 = por %p95, %p96
      %s99 = sadd.s32 %s98, 1
      %p102 = scmp.eq.s32.totalorder %s12, 2
      %p103 = scmp.ne.s32.totalorder %s98, %s100
      %p104 = scmp.eq.s32.totalorder %s12, 0
      %p105 = por %p103, %p104
      %p106 = scmp.ne.s32.totalorder %s98, %s100
      %p107 = scmp.eq.s32.totalorder %s17, 2
      %p108 = por %p106, %p107
      %p109 = scmp.ne.s32.totalorder %s100, %s101
      %p110 = scmp.eq.s32.totalorder %s17, 0
      %p111 = por %p109, %p110
      %p112 = scmp.ne.s32.totalorder %s100, %s101
      %p113 = scmp.eq.s32.totalorder %s18, 2
      %p114 = por %p112, %p113
      %p116 = scmp.ne.s32.totalorder %s101, %s115
      %p117 = scmp.eq.s32.totalorder %s18, 0
      %p118 = por %p116, %p117
      %s120 = sadd.s32 %s119, 1
      %p123 = scmp.eq.s32.totalorder %s12, 2
      %p124 = scmp.ne.s32.totalorder %s119, %s121
      %p125 = scmp.eq.s32.totalorder %s12, 0
      %p126 = por %p124, %p125
      %p127 = scmp.ne.s32.totalorder %s119, %s121
      %p128 = scmp.eq.s32.totalorder %s17, 2
      %p129 = por %p127, %p128
      %p130 = scmp.ne.s32.totalorder %s121, %s122
      %p131 = scmp.eq.s32.totalorder %s17, 0
      %p132 = por %p130, %p131
      %p133 = scmp.ne.s32.totalorder %s121, %s122
      %p134 = scmp.eq.s32.totalorder %s18, 2
      %p135 = por %p133, %p134
      %p137 = scmp.ne.s32.totalorder %s122, %s136
      %p138 = scmp.eq.s32.totalorder %s18, 0
      %p139 = por %p137, %p138
      %s141 = sadd.s32 %s140, 1
      %p144 = scmp.eq.s32.totalorder %s12, 2
      %p145 = scmp.ne.s32.totalorder %s140, %s142
      %p146 = scmp.eq.s32.totalorder %s12, 0
      %p147 = por %p145, %p146
      %p148 = scmp.ne.s32.totalorder %s140, %s142
      %p149 = scmp.eq.s32.totalorder %s17, 2
      %p150 = por %p148, %p149
      %p151 = scmp.ne.s32.totalorder %s142, %s143
      %p152 = scmp.eq.s32.totalorder %s17, 0
      %p153 = por %p151, %p152
      %p154 = scmp.ne.s32.totalorder %s142, %s143
      %p155 = scmp.eq.s32.totalorder %s18, 2
      %p156 = por %p154, %p155
      %p158 = scmp.ne.s32.totalorder %s143, %s157
      %p159 = scmp.eq.s32.totalorder %s18, 0
      %p160 = por %p158, %p159
      %p161 = scmp.le.s32.totalorder 1, %s12
      %p162 = scmp.lt.s32.totalorder %s12, 4
      %p163 = pnand %p161, %p162
      %p164 = pneg %p163
      // Predicated region
      $region9: #{tpu_custom_call.1} parent=5 // pred_check
        _
      $region10: #{tpu_custom_call.1} parent=5 // pred_check_branch
        %166 = sbr.rel (%p163) target = $region12
      $region11: #{tpu_custom_call.1} parent=5 // pred_region
        %s167 = ssub.s32 %s12, 1
        // Predicated region
        $region13: #{tpu_custom_call.1} parent=11 // pred_check
          %p168 = pneg %p111
        $region14: #{tpu_custom_call.1} parent=11 // pred_check_branch
          %170 = sbr.rel (%p168) target = $region16
        $region15: #{tpu_custom_call.1} parent=11 // pred_region
          _
        $region16: #{tpu_custom_call.1} parent=11 // pred_fallthru
          _
        // Predicated region
        $region17: #{tpu_custom_call.1} parent=11 // pred_check
          %p171 = pneg %p132
        $region18: #{tpu_custom_call.1} parent=11 // pred_check_branch
          %173 = sbr.rel (%p171) target = $region20
        $region19: #{tpu_custom_call.1} parent=11 // pred_region
          _
        $region20: #{tpu_custom_call.1} parent=11 // pred_fallthru
          _
      $region12: #{tpu_custom_call.1} parent=5 // pred_fallthru
        _
      %p174 = scmp.lt.s32.totalorder %s12, 3
      // Predicated region
      $region21: #{tpu_custom_call.1} parent=5 // pred_check
        %p175 = pneg %p174
      $region22: #{tpu_custom_call.1} parent=5 // pred_check_branch
        %177 = sbr.rel (%p175) target = $region24
      $region23: #{tpu_custom_call.1} parent=5 // pred_region
        // Predicated region
        $region25: #{tpu_custom_call.1} parent=23 // pred_check
          %p178 = pneg %p32
        $region26: #{tpu_custom_call.1} parent=23 // pred_check_branch
          %180 = sbr.rel (%p178) target = $region28
        $region27: #{tpu_custom_call.1} parent=23 // pred_region
          %p181 = scmp.lt.s32.totalorder %s12, 2
          %s182 = scalar_select %p181, %s12, 2
          %s183 = smul.addr %s182, 8
          %s184 = scalar_lea.vmem %s0, %s183
        $region28: #{tpu_custom_call.1} parent=23 // pred_fallthru
          _
        // Predicated region
        $region29: #{tpu_custom_call.1} parent=23 // pred_check
          %p185 = pneg %p58
        $region30: #{tpu_custom_call.1} parent=23 // pred_check_branch
          %187 = sbr.rel (%p185) target = $region32
        $region31: #{tpu_custom_call.1} parent=23 // pred_region
          %p188 = scmp.lt.s32.totalorder %s12, 2
          %s189 = scalar_select %p188, %s12, 2
          %s190 = smul.addr %s189, 8
          %s191 = scalar_lea.vmem %s1, %s190
        $region32: #{tpu_custom_call.1} parent=23 // pred_fallthru
          _
        // Predicated region
        $region33: #{tpu_custom_call.1} parent=23 // pred_check
          %p192 = pneg %p84
        $region34: #{tpu_custom_call.1} parent=23 // pred_check_branch
          %194 = sbr.rel (%p192) target = $region36
        $region35: #{tpu_custom_call.1} parent=23 // pred_region
          %p195 = scmp.lt.s32.totalorder %s12, 2
          %s196 = scalar_select %p195, %s12, 2
          %s197 = smul.addr %s196, 8
          %s198 = scalar_lea.vmem %s2, %s197
        $region36: #{tpu_custom_call.1} parent=23 // pred_fallthru
          _
      $region24: #{tpu_custom_call.1} parent=5 // pred_fallthru
        _
      %p199 = scmp.le.s32.totalorder 1, %s12
      %p200 = scmp.lt.s32.totalorder %s12, 4
      %p201 = pnand %p199, %p200
      %p202 = pneg %p201
      // Predicated region
      $region37: #{tpu_custom_call.1} parent=5 // pred_check
        _
      $region38: #{tpu_custom_call.1} parent=5 // pred_check_branch
        %204 = sbr.rel (%p201) target = $region40
      $region39: #{tpu_custom_call.1} parent=5 // pred_region
        %s205 = ssub.s32 %s12, 1
        %p206 = scmp.lt.s32.totalorder %s17, 2
        %s207 = scalar_select %p206, %s17, 2
        %s208 = smul.addr %s207, 8
        %s209 = scalar_lea.vmem %s0, %s208
        %p210 = pneg %p38
        %p211 = pneg %p35
        %p212 = scmp.lt.s32.totalorder %s17, 2
        %s213 = scalar_select %p212, %s17, 2
        %s214 = smul.addr %s213, 8
        %s215 = scalar_lea.vmem %s1, %s214
        %p216 = pneg %p64
        %p217 = pneg %p61
        %p218 = scmp.lt.s32.totalorder %s17, 2
        %s219 = scalar_select %p218, %s17, 2
        %s220 = smul.addr %s219, 8
        %s221 = scalar_lea.vmem %s2, %s220
        %p222 = pneg %p90
        %p223 = pneg %p87
        %p224 = pneg %p111
        %p225 = pneg %p108
        %p226 = pneg %p132
        %p227 = pneg %p129
        %p228 = pneg %p153
        %p229 = pneg %p150
        %p230 = scmp.lt.s32.totalorder %s17, 2
        %s231 = scalar_select %p230, %s17, 2
        %s232 = smul.addr %s231, 8
        %s233 = scalar_lea.vmem %s0, %s232
        %p234 = scmp.lt.s32.totalorder %s17, 2
        %s235 = scalar_select %p234, %s17, 2
        %s236 = smul.addr %s235, 8
        %s237 = scalar_lea.vmem %s1, %s236
        %p238 = scmp.lt.s32.totalorder %s17, 2
        %s239 = scalar_select %p238, %s17, 2
        %s240 = smul.addr %s239, 8
        %s241 = scalar_lea.vmem %s2, %s240
        %p242 = scmp.eq.s32.totalorder %s17, 0
        // Predicated region
        $region41: #{tpu_custom_call.1} parent=39 // pred_check
          %p243 = pneg %p242
        $region42: #{tpu_custom_call.1} parent=39 // pred_check_branch
          %245 = sbr.rel (%p243) target = $region44
        $region43: #{tpu_custom_call.1} parent=39 // pred_region
          %vm246 = vcmask 0
          %247 = vst.msk [vmem:[#allocation2] sm:$0x1] %vm246, 0.0
          %248 = vst.msk [vmem:[#allocation3] sm:$0x1] %vm246, 0.0
          %249 = vst.msk [vmem:[#allocation4] sm:$0x1] %vm246, 0.0
        $region44: #{tpu_custom_call.1} parent=39 // pred_fallthru
          _
        %v250 = vld [vmem:[%s237] sm:$0xff]
        %v251 = vld [vmem:[%s241] sm:$0xff]
        %v252 = vld [vmem:[%s233] sm:$0xff]
        %s253 = smul.u32 %s17, 8
        %v254 = vlaneseq
        %v255 = vshrl.u32 %v254, 7
        %v256 = vstv %s253
        %v257 = vadd.s32 %v256, %v255
        %vm258 = vcmp.lt.s32.totalorder %v257, 20
        %v259 = vsel %vm258, 1, 0
        %vm260 = vcmp.eq.s32.totalorder %v259, 1
        %v261 = vsel %vm260, %v250, 0.0
        %vm262 = vcmask 64512
        %v263 = vsel %vm262, %v261, -inf
        %264 = vmax.xlane.f32.xlu0 %v263
        %v265 = vpop.xlane.xlu0 %264
        %v266 = vsub.f32 %v261, %v265
        %v267 = vmul.f32 %v266, 1.442695
        %v268 = vpow.pop %v267
        %v269 = vsel %vm262, %v268, 0.0
        %270 = vadd.xlane.f32.xlu0 %v269
        %v271 = vpop.xlane.xlu0 %270
        %v272 = vlog2.pop %v271
        %v273 = vmul.f32 %v272, 0.6931472
        %v274 = vadd.f32 %v273, %v265
        %v275 = vlaneseq
        %v276 = vand.u32 %v275, 127
        %277 = vset.pattern.permute.xlu0 0
        %278 = vperm.xlu0 %277, %v252
        %v279 = vpop.permute.xlu0 %278
        %vm280 = vcmp.eq.s32.totalorder %v276, %v279
        %v281 = vsel %vm280, %v261, 0.0
        %v282 = vsel %vm262, %v281, 0.0
        %283 = vadd.xlane.f32.xlu0 %v282
        %v284 = vpop.xlane.xlu0 %283
        %v285 = vsub.f32 %v274, %v284
        %v286 = vsel %vm258, %v285, 0.0
        %vm287 = vcmask 7168
        %v288 = vsel %vm287, %v286, 0.0
        %289 = vadd.xlane.f32.xlu0 %v288
        %v290 = vpop.xlane.xlu0 %289
        %v291 = vrot.slane %v290, 4
        %v292 = vadd.f32 %v290, %v291
        %v293 = vrot.slane %v292, 2
        %v294 = vadd.f32 %v292, %v293
        %v295 = vrot.slane %v294, 1
        %v296 = vadd.f32 %v294, %v295
        %s297 = vtos %v296
        %v298 = vstv %s297
        %v299 = vld [vmem:[%s3] sm:$0xff]
        %v300 = vld [vmem:[%s4] sm:$0x1]
        %v301 = vrcp.pop %v300
        %v302 = vmul.f32 1.0, %v301
        %v303 = vsel %vm280, 1, 0
        %v304 = vcvt.s32.f32 %v303
        %v306 = vsel %vm262, %v304, 0
        %308 = vmatprep.subr.mxu0 0.0
        %309 = vmatpush1.msra.mxu0 %v299
        %310 = vmatprep.subr.mxu0 0.0
        %311 = vmatpush1.msra.mxu0 0.0
        %312 = vmatprep.subr.mxu0 0.0
        %313 = vmatpush1.msra.mxu0 0.0
        %314 = vmatprep.subr.mxu0 0.0
        %315 = vmatpush1.msra.mxu0 0.0
        %316 = vmatprep.subr.mxu0 0.0
        %317 = vmatpush1.msra.mxu0 0.0
        %318 = vmatprep.subr.mxu0 0.0
        %319 = vmatpush1.msra.mxu0 0.0
        %320 = vmatprep.subr.mxu0 0.0
        %321 = vmatpush1.msra.mxu0 0.0
        %322 = vmatprep.subr.mxu0 0.0
        %323 = vmatpush1.msra.mxu0 0.0
        %324 = vmatprep.subr.mxu0 0.0
        %325 = vmatpush1.msra.mxu0 0.0
        %326 = vmatprep.subr.mxu0 0.0
        %327 = vmatpush1.msra.mxu0 0.0
        %328 = vmatprep.subr.mxu0 0.0
        %329 = vmatpush1.msra.mxu0 0.0
        %330 = vmatprep.subr.mxu0 0.0
        %331 = vmatpush1.msra.mxu0 0.0
        %332 = vmatprep.subr.mxu0 0.0
        %333 = vmatpush1.msra.mxu0 0.0
        %334 = vmatprep.subr.mxu0 0.0
        %335 = vmatpush1.msra.mxu0 0.0
        %336 = vmatprep.subr.mxu0 0.0
        %337 = vmatpush1.msra.mxu0 0.0
        %338 = vmatprep.subr.mxu0 0.0
        %339 = vmatpush1.msra.mxu0 0.0
        %340 = vmatprep.subr.mxu0 0.0
        %341 = vmatpush1.msra.mxu0 0.0
        %342 = vmatprep.subr.mxu0 0.0
        %343 = vmatpush1.msra.mxu0 0.0
        %344 = vmatprep.subr.mxu0 0.0
        %345 = vmatpush1.msra.mxu0 0.0
        %346 = vmatprep.subr.mxu0 0.0
        %347 = vmatpush1.msra.mxu0 0.0
        %348 = vmatprep.subr.mxu0 0.0
        %349 = vmatpush1.msra.mxu0 0.0
        %350 = vmatprep.subr.mxu0 0.0
        %351 = vmatpush1.msra.mxu0 0.0
        %352 = vmatprep.subr.mxu0 0.0
        %353 = vmatpush1.msra.mxu0 0.0
        %354 = vmatprep.subr.mxu0 0.0
        %355 = vmatpush1.msra.mxu0 0.0
        %356 = vmatprep.subr.mxu0 0.0
        %357 = vmatpush1.msra.mxu0 0.0
        %358 = vmatprep.subr.mxu0 0.0
        %359 = vmatpush1.msra.mxu0 0.0
        %360 = vmatprep.subr.mxu0 0.0
        %361 = vmatpush1.msra.mxu0 0.0
        %362 = vmatprep.subr.mxu0 0.0
        %363 = vmatpush1.msra.mxu0 0.0
        %364 = vmatprep.subr.mxu0 0.0
        %365 = vmatpush1.msra.mxu0 0.0
        %366 = vmatprep.subr.mxu0 0.0
        %367 = vmatpush1.msra.mxu0 0.0
        %368 = vmatprep.subr.mxu0 0.0
        %369 = vmatpush1.msra.mxu0 0.0
        %370 = vmatprep.subr.mxu0 0.0
        %371 = vmatpush1.msra.mxu0 0.0
        %372 = vmatprep.mubr.f32.mxu0 0.0
        %373 = vmatmul.mubr.f32.gmra.mrb[0].mxu0 %v306
        %v374 = vpop.f32.mrb[0].mxu0
        %v375 = vadd.f32 0.0, %v374
        %v376 = vpop.f32.mrb[0].mxu0
        %377 = vdwg.mxu0
        %v378 = vsub.f32 %v251, %v375
        %v379 = vsel %vm260, %v378, 0.0
        %v380 = vmul.f32 %v379, %v379
        %v382 = vlaneseq
        %v383 = vshrl.u32 %v382, 7
        %v384 = vsub.s32 0, %v383
        %v385 = vrot.slane %v302, %v384
        %v387 = vmul.f32 %v380, %v385
        %vm388 = vcmask 261120
        %v389 = vsel %vm388, %v387, 0.0
        %390 = vadd.xlane.f32.xlu0 %v389
        %v391 = vpop.xlane.xlu0 %390
        %v392 = vrot.slane %v391, 4
        %v393 = vadd.f32 %v391, %v392
        %v394 = vrot.slane %v393, 2
        %v395 = vadd.f32 %v393, %v394
        %v396 = vrot.slane %v395, 1
        %v397 = vadd.f32 %v395, %v396
        %s398 = vtos %v397
        %v399 = vstv %s398
        %v400 = vld [vmem:[#allocation2] sm:$0x1]
        %v401 = vadd.f32 %v400, %v298
        %vm402 = vcmask 0
        %403 = vst.msk [vmem:[#allocation2] sm:$0x1] %vm402, %v401
        %v404 = vld [vmem:[#allocation3] sm:$0x1]
        %v405 = vadd.f32 %v404, %v399
        %406 = vst.msk [vmem:[#allocation3] sm:$0x1] %vm402, %v405
        %p407 = scmp.eq.s32.totalorder %s17, 2
        // Predicated region
        $region45: #{tpu_custom_call.1} parent=39 // pred_check
          %p408 = pneg %p407
        $region46: #{tpu_custom_call.1} parent=39 // pred_check_branch
          %410 = sbr.rel (%p408) target = $region48
        $region47: #{tpu_custom_call.1} parent=39 // pred_region
          %v411 = vld [vmem:[%s4] sm:$0x1]
          %v412 = vlog2.pop %v411
          %v413 = vmul.f32 %v412, 0.6931472
          %vm414 = vcmask 253952
          %v415 = vsel %vm414, %v413, 0.0
          %416 = vadd.xlane.f32.xlu0 %v415
          %v417 = vpop.xlane.xlu0 %416
          %v418 = vrot.slane %v417, 4
          %v419 = vadd.f32 %v417, %v418
          %v420 = vrot.slane %v419, 2
          %v421 = vadd.f32 %v419, %v420
          %v422 = vrot.slane %v421, 1
          %v423 = vadd.f32 %v421, %v422
          %s424 = vtos %v423
          %v425 = vstv %s424
          %v426 = vmul.f32 %v425, 0.5
          %v427 = vld [vmem:[#allocation2] sm:$0x1]
          %v428 = vmul.f32 %v427, 0.05
          %v429 = vld [vmem:[#allocation3] sm:$0x1]
          %v430 = vmul.f32 %v429, 0.025
          %v431 = vmul.f32 %v430, 1.25
          %v432 = vmul.f32 %v426, 0.25
          %v433 = vadd.f32 %v431, %v432
          %v434 = vmul.f32 %v433, 0.5
          %v435 = vadd.f32 %v428, %v434
          %436 = vst.msk [vmem:[#allocation4] sm:$0x1] %vm402, %v435
        $region48: #{tpu_custom_call.1} parent=39 // pred_fallthru
          _
        // Predicated region
        $region49: #{tpu_custom_call.1} parent=39 // pred_check
          %p437 = pneg %p150
        $region50: #{tpu_custom_call.1} parent=39 // pred_check_branch
          %439 = sbr.rel (%p437) target = $region52
        $region51: #{tpu_custom_call.1} parent=39 // pred_region
          %s441 = ssub.s32 16, 16
          %442 = vsyncadd [#allocation5], %s441
          %s444 = sshll.u32 [#allocation4], 4
          %s445 = int_to_ptr.vmem [resolvable:$true] %s444
          %447 = dma.vmem_to_hbm [thread:$0]  %s445, 16, %s5, [#allocation5]
        $region52: #{tpu_custom_call.1} parent=39 // pred_fallthru
          _
        // Predicated region
        $region53: #{tpu_custom_call.1} parent=39 // pred_check
          %p448 = pneg %p150
        $region54: #{tpu_custom_call.1} parent=39 // pred_check_branch
          %450 = sbr.rel (%p448) target = $region56
        $region55: #{tpu_custom_call.1} parent=39 // pred_region
          %451 = dma.done [#allocation5], 16
        $region56: #{tpu_custom_call.1} parent=39 // pred_fallthru
          _
      $region40: #{tpu_custom_call.1} parent=5 // pred_fallthru
        _
      %p452 = scmp.le.s32.totalorder 2, %s12
      // Predicated region
      $region57: #{tpu_custom_call.1} parent=5 // pred_check
        %p453 = pneg %p452
      $region58: #{tpu_custom_call.1} parent=5 // pred_check_branch
        %455 = sbr.rel (%p453) target = $region60
      $region59: #{tpu_custom_call.1} parent=5 // pred_region
        %s456 = ssub.s32 %s12, 2
      $region60: #{tpu_custom_call.1} parent=5 // pred_fallthru
        _
    $region6: #{tpu_custom_call.1} parent=1 // loop_footer
      %s16 = sadd.s32 1, %s12
    $region7: #{tpu_custom_call.1} parent=1 // loop_footer_branch
      %11 = sbr.rel target = $region3
    $region8: #{tpu_custom_call.1} parent=1 // loop_exit
      _
    %457 = vsyncpa [#allocation5], 1
    %s458 = scalar_lea.sflag [#allocation5], 1
    %459 = vsyncpa %s458, 1

</llo_original>
